<compile_context>
chip_gen: v7x
topology: tpu7x:2x2x1
jax: 0.10.0
libtpu: 0.0.40
codegen_flags: <defaults>
</compile_context>

<pallas_src>
import functools

import jax
import jax.numpy as jnp
from jax.experimental import pallas as pl
from jax.experimental.pallas import tpu as pltpu


def _round_up(x, m):
    return ((x + m - 1) // m) * m


def _pick_batch_tile(B, block_b):
    """Largest batch tile <= block_b (multiple of 8) that avoids padding if it can."""
    target = max(8, min(_round_up(block_b, 8), _round_up(B, 8)))
    if B % 8 == 0:
        for cand in range(target, 7, -8):
            if B % cand == 0:
                return cand, B          # divides B -> no batch padding
    return target, _round_up(B, target)


def _spec(shape, index_map, mode=None):
    if mode is None:
        return pl.BlockSpec(shape, index_map)
    return pl.BlockSpec(shape, index_map, pipeline_mode=mode)


# ------------------------------ kernels ------------------------------------ #

def _mlp_kernel_resident(x_ref, w1_ref, b1_ref, w2_ref, b2_ref, o_ref):
    # Both weight matrices fully resident in VMEM; one grid step per batch tile.
    x = x_ref[...].astype(w1_ref.dtype)                       # cast in-kernel
    h = jnp.dot(x, w1_ref[...], preferred_element_type=jnp.float32) + b1_ref[...]
    out = jnp.dot(h.astype(w2_ref.dtype), w2_ref[...],
                  preferred_element_type=jnp.float32)
    o_ref[...] = (out + b2_ref[...]).astype(o_ref.dtype)


def _mlp_kernel_htiled(x_ref, w1_ref, b1_ref, w2_ref, b2_ref, o_ref, acc_ref):
    # Hidden dim tiled on the "arbitrary" grid axis; f32 accumulator in VMEM.
    k = pl.program_id(1)

    @pl.when(k == 0)
    def _():
        acc_ref[...] = jnp.zeros_like(acc_ref)

    x = x_ref[...].astype(w1_ref.dtype)
    h = jnp.dot(x, w1_ref[...], preferred_element_type=jnp.float32) + b1_ref[...]
    acc_ref[...] += jnp.dot(h.astype(w2_ref.dtype), w2_ref[...],
                            preferred_element_type=jnp.float32)

    @pl.when(k == pl.num_programs(1) - 1)
    def _():
        o_ref[...] = (acc_ref[...] + b2_ref[...]).astype(o_ref.dtype)


# ------------------------------ wrapper ------------------------------------ #

@functools.partial(jax.jit, static_argnames=("block_b", "compute_dtype", "out_dtype"))
def mlp_forward(x, w1, b1, w2, b2, *, block_b=256,
                compute_dtype=jnp.bfloat16, out_dtype=None):
    """x: (B, D_in); w1: (D_in, H); b1: (H,); w2: (H, D_out); b2: (D_out,).

    Returns (B, D_out) in `out_dtype` (default: x.dtype), computing
    y = (x @ w1 + b1) @ w2 + b2 with bf16 MXU operands and f32 accumulation.
    """
    B, d_in = x.shape
    H, d_out = w2.shape
    assert w1.shape == (d_in, H) and b1.shape == (H,) and b2.shape == (d_out,)
    out_dtype = x.dtype if out_dtype is None else out_dtype

    bb, B_p = _pick_batch_tile(B, block_b)
    d_out_p = _round_up(d_out, 128)                 # lane-dense output

    # Fallback cast: callers should pre-store weights in compute_dtype
    # (prepare_mlp_params) so this is a trace-time no-op.
    if w1.dtype != compute_dtype:
        w1 = w1.astype(compute_dtype)
    if w2.dtype != compute_dtype:
        w2 = w2.astype(compute_dtype)
    b1 = b1.astype(jnp.float32)
    b2 = b2.astype(jnp.float32)

    w_isz = jnp.dtype(compute_dtype).itemsize
    x_isz = jnp.dtype(x.dtype).itemsize
    o_isz = jnp.dtype(out_dtype).itemsize

    # Per-generation VMEM budget (v5e/v6e: 128 MiB physical, v7x: 64 MiB).
    try:
        vmem_cap = getattr(pltpu.get_tpu_info(), "vmem_capacity_bytes", 0) or (64 << 20)
    except Exception:
        vmem_cap = 64 << 20                         # conservative (v7x) fallback
    hard_cap = (100 << 20) if vmem_cap >= (96 << 20) else (48 << 20)
    budget = hard_cap - (4 << 20)

    def vmem_est(bh, nbuf_w):
        return (2 * bb * d_in * x_isz                              # x tile (2x buffered)
                + 2 * bb * d_out_p * o_isz                         # out tile (2x buffered)
                + bb * d_out_p * 4                                 # f32 accumulator
                + nbuf_w * (d_in * bh + bh * d_out_p) * w_isz      # W1 + W2 blocks
                + nbuf_w * bh * 4 + 2 * d_out_p * 4                # biases (f32)
                + bb * bh * (4 + w_isz)                            # h live (f32 + cast)
                + bb * d_in * w_isz)                               # x cast live

    if vmem_est(H, 1) <= budget:
        block_h = H                                  # weights fully resident
    else:
        block_h = max(128, (H // 128) * 128)
        while block_h > 128 and vmem_est(block_h, 2) > budget:
            block_h -= 128

    H_p = _round_up(H, block_h)
    grid_h = H_p // block_h
    nbuf_w = 1 if grid_h == 1 else 2
    vmem_limit = int(min(max(vmem_est(block_h, nbuf_w) + (8 << 20), 32 << 20), hard_cap))

    # Zero-padding (all trace-time no-ops at aligned shapes).
    if H_p != H:
        w1 = jnp.pad(w1, ((0, 0), (0, H_p - H)))
        b1 = jnp.pad(b1, ((0, H_p - H),))
        w2 = jnp.pad(w2, ((0, H_p - H), (0, 0)))
    if d_out_p != d_out:
        w2 = jnp.pad(w2, ((0, 0), (0, d_out_p - d_out)))
        b2 = jnp.pad(b2, ((0, d_out_p - d_out),))
    if B_p != B:
        x = jnp.pad(x, ((0, B_p - B), (0, 0)))

    b1_2d = b1.reshape(1, H_p)
    b2_2d = b2.reshape(1, d_out_p)

    # Single-buffer grid-invariant operands (no benefit from double-buffering).
    w_mode = pl.Buffered(1) if grid_h == 1 else None
    const_mode = pl.Buffered(1)                      # b2 never changes

    in_specs = [
        _spec((bb, d_in), lambda i, k: (i, 0)),                      # x tile
        _spec((d_in, block_h), lambda i, k: (0, k), w_mode),         # W1
        _spec((1, block_h), lambda i, k: (0, k), w_mode),            # b1
        _spec((block_h, d_out_p), lambda i, k: (k, 0), w_mode),      # W2
        _spec((1, d_out_p), lambda i, k: (0, 0), const_mode),        # b2
    ]
    out_spec = pl.BlockSpec((bb, d_out_p), lambda i, k: (i, 0))

    if grid_h == 1:
        kernel = _mlp_kernel_resident
        scratch = []
    else:
        kernel = _mlp_kernel_htiled
        scratch = [pltpu.VMEM((bb, d_out_p), jnp.float32)]

    out = pl.pallas_call(
        kernel,
        out_shape=jax.ShapeDtypeStruct((B_p, d_out_p), out_dtype),
        grid_spec=pltpu.PrefetchScalarGridSpec(
            num_scalar_prefetch=0,
            grid=(B_p // bb, grid_h),
            in_specs=in_specs,
            out_specs=out_spec,
            scratch_shapes=scratch,
        ),
        compiler_params=pltpu.CompilerParams(
            dimension_semantics=("parallel", "arbitrary"),
            vmem_limit_bytes=vmem_limit,
        ),
    )(x, w1, b1_2d, w2, b2_2d)

    if B_p != B or d_out_p != d_out:
        out = out[:B, :d_out]
    return out


# ------------------------------ params -------------------------------------- #

def init_mlp_params(key, input_dim, output_dim, hidden_dim):
    """nn.Linear-style init, U(-1/sqrt(fan_in), 1/sqrt(fan_in)); (in, out) layout."""
    k1, k2, k3, k4 = jax.random.split(key, 4)
    lim1 = 1.0 / jnp.sqrt(input_dim)
    lim2 = 1.0 / jnp.sqrt(hidden_dim)
    w1 = jax.random.uniform(k1, (input_dim, hidden_dim), jnp.float32, -lim1, lim1)
    b1 = jax.random.uniform(k2, (hidden_dim,), jnp.float32, -lim1, lim1)
    w2 = jax.random.uniform(k3, (hidden_dim, output_dim), jnp.float32, -lim2, lim2)
    b2 = jax.random.uniform(k4, (output_dim,), jnp.float32, -lim2, lim2)
    return w1, b1, w2, b2


def prepare_mlp_params(w1, b1, w2, b2, compute_dtype=jnp.bfloat16):
    """One-time weight cast to the MXU streaming dtype (do at init, not per call)."""
    return (w1.astype(compute_dtype), b1.astype(jnp.float32),
            w2.astype(compute_dtype), b2.astype(jnp.float32))


# ------------------------------ demo / check -------------------------------- #

if __name__ == "__main__":
    def ref_forward(x, w1c, b1, w2c, b2):
        # Pure-JAX reference of the same mixed-precision math as the kernel.
        h = jnp.dot(x.astype(w1c.dtype), w1c,
                    preferred_element_type=jnp.float32) + b1
        return jnp.dot(h.astype(w2c.dtype), w2c,
                       preferred_element_type=jnp.float32) + b2

    key = jax.random.PRNGKey(0)
    kx, kp, kx2, kp2 = jax.random.split(key, 4)

    # Test 1: aligned shapes, pre-cast (bf16) weights; 2-step parallel batch grid.
    B, Din, Hd, Dout = 512, 128, 256, 128
    x = jax.random.normal(kx, (B, Din), jnp.float32)
    w1, b1, w2, b2 = init_mlp_params(kp, Din, Dout, Hd)
    w1c, b1c, w2c, b2c = prepare_mlp_params(w1, b1, w2, b2)

    out = jax.block_until_ready(mlp_forward(x, w1c, b1c, w2c, b2c, block_b=256))
    ref = ref_forward(x, w1c, b1c, w2c, b2c)
    assert out.shape == (B, Dout)
    assert jnp.allclose(out, ref, atol=2e-2, rtol=2e-2), float(
        jnp.max(jnp.abs(out - ref)))

    # Test 2: unaligned shapes (odd batch, d_out=40 exercises lane-padding) and
    # f32 weights (exercises the fallback cast path inside the wrapper).
    B2, Din2, Hd2, Dout2 = 200, 64, 96, 40
    x2 = jax.random.normal(kx2, (B2, Din2), jnp.float32)
    w1b, b1b, w2b, b2b = init_mlp_params(kp2, Din2, Dout2, Hd2)

    out2 = jax.block_until_ready(mlp_forward(x2, w1b, b1b, w2b, b2b))
    ref2 = ref_forward(x2, w1b.astype(jnp.bfloat16), b1b,
                       w2b.astype(jnp.bfloat16), b2b)
    assert out2.shape == (B2, Dout2)
    assert jnp.allclose(out2, ref2, atol=2e-2, rtol=2e-2), float(
        jnp.max(jnp.abs(out2 - ref2)))

    print("KERNEL_OK")
</pallas_src>

<mosaic_0001>
module attributes {stable_mosaic.version = 11 : i64} {
  func.func @_mlp_kernel_resident(%arg0: i32, %arg1: i32, %arg2: memref<256x128xf32, #tpu.memory_space<vmem>>, %arg3: memref<128x256xbf16, #tpu.memory_space<vmem>>, %arg4: memref<1x256xf32, #tpu.memory_space<vmem>>, %arg5: memref<256x128xbf16, #tpu.memory_space<vmem>>, %arg6: memref<1x128xf32, #tpu.memory_space<vmem>>, %arg7: memref<256x128xf32, #tpu.memory_space<vmem>>) attributes {dimension_semantics = [#tpu.dimension_semantics<parallel>, #tpu.dimension_semantics<arbitrary>], iteration_bounds = array<i64: 2, 1>, scalar_prefetch = 0 : i64, scratch_operands = 0 : i64, tpu.core_type = #tpu.core_type<tc>, window_params = [{transform_indices = @transform_0, window_bounds = array<i64: 256, 128>}, {pipeline_mode = #tpu.pipeline_mode<synchronous>, transform_indices = @transform_1, window_bounds = array<i64: 128, 256>}, {pipeline_mode = #tpu.pipeline_mode<synchronous>, transform_indices = @transform_2, window_bounds = array<i64: 1, 256>}, {pipeline_mode = #tpu.pipeline_mode<synchronous>, transform_indices = @transform_3, window_bounds = array<i64: 256, 128>}, {pipeline_mode = #tpu.pipeline_mode<synchronous>, transform_indices = @transform_4, window_bounds = array<i64: 1, 128>}, {transform_indices = @transform_5, window_bounds = array<i64: 256, 128>}]} {
    %c0 = arith.constant 0 : index
    %c0_0 = arith.constant 0 : index
    %0 = vector.load %arg2[%c0, %c0_0] : memref<256x128xf32, #tpu.memory_space<vmem>>, vector<256x128xf32>
    %1 = arith.truncf %0 : vector<256x128xf32> to vector<256x128xbf16>
    %c0_1 = arith.constant 0 : index
    %c0_2 = arith.constant 0 : index
    %2 = vector.load %arg3[%c0_1, %c0_2] : memref<128x256xbf16, #tpu.memory_space<vmem>>, vector<128x256xbf16>
    %cst = arith.constant dense<0.000000e+00> : vector<256x256xf32>
    %3 = tpu.matmul %1, %2, %cst {dimension_numbers = #tpu.dot_dimension_numbers<[1], [0], [0], [1], [0, 0, 1, 1], [], []>} : vector<256x128xbf16>, vector<128x256xbf16>, vector<256x256xf32> -> vector<256x256xf32>
    %c0_3 = arith.constant 0 : index
    %c0_4 = arith.constant 0 : index
    %4 = vector.load %arg4[%c0_3, %c0_4] : memref<1x256xf32, #tpu.memory_space<vmem>>, vector<1x256xf32>
    %5 = vector.broadcast %4 : vector<1x256xf32> to vector<256x256xf32>
    %6 = arith.addf %3, %5 : vector<256x256xf32>
    %7 = arith.truncf %6 : vector<256x256xf32> to vector<256x256xbf16>
    %c0_5 = arith.constant 0 : index
    %c0_6 = arith.constant 0 : index
    %8 = vector.load %arg5[%c0_5, %c0_6] : memref<256x128xbf16, #tpu.memory_space<vmem>>, vector<256x128xbf16>
    %cst_7 = arith.constant dense<0.000000e+00> : vector<256x128xf32>
    %9 = tpu.matmul %7, %8, %cst_7 {dimension_numbers = #tpu.dot_dimension_numbers<[1], [0], [0], [1], [0, 0, 1, 1], [], []>} : vector<256x256xbf16>, vector<256x128xbf16>, vector<256x128xf32> -> vector<256x128xf32>
    %c0_8 = arith.constant 0 : index
    %c0_9 = arith.constant 0 : index
    %10 = vector.load %arg6[%c0_8, %c0_9] : memref<1x128xf32, #tpu.memory_space<vmem>>, vector<1x128xf32>
    %11 = vector.broadcast %10 : vector<1x128xf32> to vector<256x128xf32>
    %12 = arith.addf %9, %11 : vector<256x128xf32>
    %c0_10 = arith.constant 0 : index
    %c0_11 = arith.constant 0 : index
    %13 = vector.load %arg7[%c0_10, %c0_11] : memref<256x128xf32, #tpu.memory_space<vmem>>, vector<256x128xf32>
    tpu.vector_store %arg7[%c0_10, %c0_11], %12 {strides = array<i32>} : memref<256x128xf32, #tpu.memory_space<vmem>>, vector<256x128xf32>,
    return
  }
  func.func @transform_0(%arg0: i32, %arg1: i32) -> (i32, i32) {
    %c0_i32 = arith.constant 0 : i32
    %c0_i32_0 = arith.constant 0 : i32
    return %arg0, %c0_i32 : i32, i32
  }
  func.func @transform_1(%arg0: i32, %arg1: i32) -> (i32, i32) {
    %c0_i32 = arith.constant 0 : i32
    %c0_i32_0 = arith.constant 0 : i32
    return %c0_i32, %arg1 : i32, i32
  }
  func.func @transform_2(%arg0: i32, %arg1: i32) -> (i32, i32) {
    %c0_i32 = arith.constant 0 : i32
    %c0_i32_0 = arith.constant 0 : i32
    return %c0_i32, %arg1 : i32, i32
  }
  func.func @transform_3(%arg0: i32, %arg1: i32) -> (i32, i32) {
    %c0_i32 = arith.constant 0 : i32
    %c0_i32_0 = arith.constant 0 : i32
    return %arg1, %c0_i32 : i32, i32
  }
  func.func @transform_4(%arg0: i32, %arg1: i32) -> (i32, i32) {
    %c0_i32 = arith.constant 0 : i32
    %c0_i32_0 = arith.constant 0 : i32
    %c0_i32_1 = arith.constant 0 : i32
    return %c0_i32, %c0_i32_0 : i32, i32
  }
  func.func @transform_5(%arg0: i32, %arg1: i32) -> (i32, i32) {
    %c0_i32 = arith.constant 0 : i32
    %c0_i32_0 = arith.constant 0 : i32
    return %arg0, %c0_i32 : i32, i32
  }
}

</mosaic_0001>

<llo_original>
// kernel: mlp_forward.1
$region0: #{mlp_forward.1}
  #allocation0 [shape = 'u32[]', space=smem, size = 0x4, offset = 0x4, fixed_abs, tag = 'smem constant byte address 0x4 - core index']
  #allocation1 [shape = 'u32[144,128]{1,0:T(1,128)}', space=vmem, size = 0x12000, scoped, tag = 'internal scratch']
  %s0 = inlined_call_operand.hbm [shape: f32[512,128], index: 0, kind: input, shape index: {}]
  %s1 = inlined_call_operand.hbm [shape: bf16[128,256], index: 1, kind: input, shape index: {}]
  %s2 = inlined_call_operand.vmem [shape: f32[1,256], index: 2, kind: input, shape index: {}]
  %s3 = inlined_call_operand.hbm [shape: bf16[256,128], index: 3, kind: input, shape index: {}]
  %s4 = inlined_call_operand.vmem [shape: f32[1,128], index: 4, kind: input, shape index: {}]
  %s5 = inlined_call_operand.hbm [shape: f32[512,128], index: 5, kind: output, shape index: {}]
  %s6 = sld [smem:[#allocation0]]
  $region65: #{mlp_forward.1} parent=0
    _
  %s8 = ssub.s32 1, %s6
  %s9 = scalar_select 0, %s8, %s6
  $region1: #{mlp_forward.1} parent=0
    #allocation2 [shape = 'u8[262144]{0}', space=vmem, size = 0x40000, scoped, tag = 'input window, operand 0']
    #allocation3 [shape = 's32[2]{0}', space=sflag, size = 0x8, scoped, tag = 'scoped memory for mlp_forward.1']
    #allocation4 [shape = 's32[2]{0}', space=sflag, size = 0x8, scoped, tag = 'scoped memory for mlp_forward.1']
    #allocation5 [shape = 'u8[65536]{0}', space=vmem, size = 0x10000, scoped, tag = 'input window, operand 1, single buffered']
    #allocation6 [shape = 's32[1]{0}', space=sflag, size = 0x4, scoped, tag = 'scoped memory for mlp_forward.1']
    #allocation7 [shape = 'u8[65536]{0}', space=vmem, size = 0x10000, scoped, tag = 'input window, operand 3, single buffered']
    #allocation8 [shape = 'u8[262144]{0}', space=vmem, size = 0x40000, scoped, tag = 'output window, operand 0']
    %10 = vsyncpa [#allocation3], 0
    %s11 = scalar_lea.sflag [#allocation3], 1
    %12 = vsyncpa %s11, 0
    %13 = vsyncpa [#allocation6], 0
    %14 = vsyncpa [#allocation4], 0
    %s15 = scalar_lea.sflag [#allocation4], 1
    %16 = vsyncpa %s15, 0
    loop: start=0, step=1, limit=4
    $region2: #{mlp_forward.1} parent=1 // loop_pre_header
      _
    $region3: #{mlp_forward.1} parent=1 // loop_header
      %s18 = sphi 0, %s22
      %p19 = scmp.ge.s32.totalorder %s18, 4
      %s25 = sphi 0, %s37
      %s26 = sphi 0, %s33
      %s27 = sphi 0, %s25
      %s28 = sphi 0, %s26
      %s29 = sphi 0, %s27
      %s30 = sphi 0, %s28
      %s40 = sphi 0, %s42
      %s43 = sphi 0, %s40
      %s44 = sphi 0, %s43
      %s60 = sphi 0, %s44
      %s66 = sphi 0, %s68
      %s69 = sphi 0, %s66
      %s70 = sphi 0, %s69
      %s86 = sphi 0, %s70
      %s92 = sphi 0, %s94
      %s95 = sphi 0, %s92
      %s96 = sphi 0, %s95
      %s112 = sphi 0, %s96
      %s118 = sphi 0, %s120
      %s121 = sphi 0, %s118
      %s122 = sphi 0, %s121
      %s138 = sphi 0, %s122
      %s142 = sphi 0, %s142
      %s144 = sphi 0, %s142
      %s145 = sphi 0, %s144
      %s159 = sphi 0, %s145
      %s165 = sphi 0, %s167
      %s168 = sphi 0, %s165
      %s169 = sphi 0, %s168
      %s185 = sphi 0, %s169
    $region4: #{mlp_forward.1} parent=1 // loop_header_branch
      %21 = sbr.rel (%p19) target = $region8
    $region5: #{mlp_forward.1} parent=1 // loop_body
      %s23 = ssub.s32 %s18, 1
      %s24 = ssub.s32 %s18, 2
      %s31 = sadd.s32 1, %s26
      %p32 = scmp.ge.s32.totalorder %s31, 1
      %s33 = scalar_select %p32, 0, %s31
      %s34 = sadd.s32 1, %s25
      %s35 = scalar_select %p32, %s34, %s25
      %p36 = scmp.ge.s32.totalorder %s35, 2
      %s37 = scalar_select %p36, 0, %s35
      %s38 = ssub.s32 %s25, %s37
      %p39 = scmp.eq.s32.totalorder %s38, 0
      %s41 = sadd.s32 %s40, 1
      %s42 = scalar_select %p39, %s40, %s41
      %p45 = pneg %p39
      %p46 = scmp.eq.s32.totalorder %s18, 1
      %p47 = por %p45, %p46
      %p48 = scmp.ne.s32.totalorder %s40, %s43
      %p49 = scmp.eq.s32.totalorder %s18, 0
      %p50 = por %p48, %p49
      %p51 = scmp.ne.s32.totalorder %s40, %s43
      %p52 = scmp.eq.s32.totalorder %s23, 1
      %p53 = por %p51, %p52
      %p54 = scmp.ne.s32.totalorder %s43, %s44
      %p55 = scmp.eq.s32.totalorder %s23, 0
      %p56 = por %p54, %p55
      %p57 = scmp.ne.s32.totalorder %s43, %s44
      %p58 = scmp.eq.s32.totalorder %s24, 1
      %p59 = por %p57, %p58
      %p61 = scmp.ne.s32.totalorder %s44, %s60
      %p62 = scmp.eq.s32.totalorder %s24, 0
      %p63 = por %p61, %p62
      %s64 = ssub.s32 %s26, %s33
      %p65 = scmp.eq.s32.totalorder %s64, 0
      %s67 = sadd.s32 %s66, 1
      %s68 = scalar_select %p65, %s66, %s67
      %p71 = pneg %p65
      %p72 = scmp.eq.s32.totalorder %s18, 1
      %p73 = por %p71, %p72
      %p74 = scmp.ne.s32.totalorder %s66, %s69
      %p75 = scmp.eq.s32.totalorder %s18, 0
      %p76 = por %p74, %p75
      %p77 = scmp.ne.s32.totalorder %s66, %s69
      %p78 = scmp.eq.s32.totalorder %s23, 1
      %p79 = por %p77, %p78
      %p80 = scmp.ne.s32.totalorder %s69, %s70
      %p81 = scmp.eq.s32.totalorder %s23, 0
      %p82 = por %p80, %p81
      %p83 = scmp.ne.s32.totalorder %s69, %s70
      %p84 = scmp.eq.s32.totalorder %s24, 1
      %p85 = por %p83, %p84
      %p87 = scmp.ne.s32.totalorder %s70, %s86
      %p88 = scmp.eq.s32.totalorder %s24, 0
      %p89 = por %p87, %p88
      %s90 = ssub.s32 %s26, %s33
      %p91 = scmp.eq.s32.totalorder %s90, 0
      %s93 = sadd.s32 %s92, 1
      %s94 = scalar_select %p91, %s92, %s93
      %p97 = pneg %p91
      %p98 = scmp.eq.s32.totalorder %s18, 1
      %p99 = por %p97, %p98
      %p100 = scmp.ne.s32.totalorder %s92, %s95
      %p101 = scmp.eq.s32.totalorder %s18, 0
      %p102 = por %p100, %p101
      %p103 = scmp.ne.s32.totalorder %s92, %s95
      %p104 = scmp.eq.s32.totalorder %s23, 1
      %p105 = por %p103, %p104
      %p106 = scmp.ne.s32.totalorder %s95, %s96
      %p107 = scmp.eq.s32.totalorder %s23, 0
      %p108 = por %p106, %p107
      %p109 = scmp.ne.s32.totalorder %s95, %s96
      %p110 = scmp.eq.s32.totalorder %s24, 1
      %p111 = por %p109, %p110
      %p113 = scmp.ne.s32.totalorder %s96, %s112
      %p114 = scmp.eq.s32.totalorder %s24, 0
      %p115 = por %p113, %p114
      %s116 = ssub.s32 %s26, %s33
      %p117 = scmp.eq.s32.totalorder %s116, 0
      %s119 = sadd.s32 %s118, 1
      %s120 = scalar_select %p117, %s118, %s119
      %p123 = pneg %p117
      %p124 = scmp.eq.s32.totalorder %s18, 1
      %p125 = por %p123, %p124
      %p126 = scmp.ne.s32.totalorder %s118, %s121
      %p127 = scmp.eq.s32.totalorder %s18, 0
      %p128 = por %p126, %p127
      %p129 = scmp.ne.s32.totalorder %s118, %s121
      %p130 = scmp.eq.s32.totalorder %s23, 1
      %p131 = por %p129, %p130
      %p132 = scmp.ne.s32.totalorder %s121, %s122
      %p133 = scmp.eq.s32.totalorder %s23, 0
      %p134 = por %p132, %p133
      %p135 = scmp.ne.s32.totalorder %s121, %s122
      %p136 = scmp.eq.s32.totalorder %s24, 1
      %p137 = por %p135, %p136
      %p139 = scmp.ne.s32.totalorder %s122, %s138
      %p140 = scmp.eq.s32.totalorder %s24, 0
      %p141 = por %p139, %p140
      %s143 = sadd.s32 %s142, 1
      %p146 = scmp.eq.s32.totalorder %s18, 1
      %p147 = scmp.ne.s32.totalorder %s142, %s144
      %p148 = scmp.eq.s32.totalorder %s18, 0
      %p149 = por %p147, %p148
      %p150 = scmp.ne.s32.totalorder %s142, %s144
      %p151 = scmp.eq.s32.totalorder %s23, 1
      %p152 = por %p150, %p151
      %p153 = scmp.ne.s32.totalorder %s144, %s145
      %p154 = scmp.eq.s32.totalorder %s23, 0
      %p155 = por %p153, %p154
      %p156 = scmp.ne.s32.totalorder %s144, %s145
      %p157 = scmp.eq.s32.totalorder %s24, 1
      %p158 = por %p156, %p157
      %p160 = scmp.ne.s32.totalorder %s145, %s159
      %p161 = scmp.eq.s32.totalorder %s24, 0
      %p162 = por %p160, %p161
      %s163 = ssub.s32 %s25, %s37
      %p164 = scmp.eq.s32.totalorder %s163, 0
      %s166 = sadd.s32 %s165, 1
      %s167 = scalar_select %p164, %s165, %s166
      %p170 = pneg %p164
      %p171 = scmp.eq.s32.totalorder %s18, 1
      %p172 = por %p170, %p171
      %p173 = scmp.ne.s32.totalorder %s165, %s168
      %p174 = scmp.eq.s32.totalorder %s18, 0
      %p175 = por %p173, %p174
      %p176 = scmp.ne.s32.totalorder %s165, %s168
      %p177 = scmp.eq.s32.totalorder %s23, 1
      %p178 = por %p176, %p177
      %p179 = scmp.ne.s32.totalorder %s168, %s169
      %p180 = scmp.eq.s32.totalorder %s23, 0
      %p181 = por %p179, %p180
      %p182 = scmp.ne.s32.totalorder %s168, %s169
      %p183 = scmp.eq.s32.totalorder %s24, 1
      %p184 = por %p182, %p183
      %p186 = scmp.ne.s32.totalorder %s169, %s185
      %p187 = scmp.eq.s32.totalorder %s24, 0
      %p188 = por %p186, %p187
      %p189 = scmp.le.s32.totalorder 1, %s18
      %p190 = scmp.lt.s32.totalorder %s18, 3
      %p191 = pnand %p189, %p190
      %p192 = pneg %p191
      // Predicated region
      $region9: #{mlp_forward.1} parent=5 // pred_check
        _
      $region10: #{mlp_forward.1} parent=5 // pred_check_branch
        %194 = sbr.rel (%p191) target = $region12
      $region11: #{mlp_forward.1} parent=5 // pred_region
        %s195 = ssub.s32 %s18, 1
        // Predicated region
        $region13: #{mlp_forward.1} parent=11 // pred_check
          %p196 = pneg %p82
        $region14: #{mlp_forward.1} parent=11 // pred_check_branch
          %198 = sbr.rel (%p196) target = $region16
        $region15: #{mlp_forward.1} parent=11 // pred_region
          %s199 = smul.u32 2, %s28
          %s201 = ssub.s32 2048, 2048
          %202 = vsyncadd [#allocation6], %s201
          %s203 = smul.addr %s199, 64
          %s204 = scalar_lea.hbm %s1, %s203
          %s205 = sshll.u32 [#allocation5], 4
          %s206 = int_to_ptr.vmem [resolvable:$true] %s205
          %211 = dma.hbm_to_vmem [thread:$0]  %s204, 2048, %s206, [#allocation6], 128, 128, 8
        $region16: #{mlp_forward.1} parent=11 // pred_fallthru
          _
        // Predicated region
        $region17: #{mlp_forward.1} parent=11 // pred_check
          %p212 = pneg %p108
        $region18: #{mlp_forward.1} parent=11 // pred_check_branch
          %214 = sbr.rel (%p212) target = $region20
        $region19: #{mlp_forward.1} parent=11 // pred_region
          %s215 = smul.u32 2, %s28
          %p216 = scmp.lt.s32.totalorder %s215, 1
          %s217 = scalar_select %p216, %s215, 1
          %s218 = scalar_lea.vmem %s2, %s217
          %s219 = smul.u32 2, %s28
        $region20: #{mlp_forward.1} parent=11 // pred_fallthru
          _
        // Predicated region
        $region21: #{mlp_forward.1} parent=11 // pred_check
          %p220 = pneg %p134
        $region22: #{mlp_forward.1} parent=11 // pred_check_branch
          %222 = sbr.rel (%p220) target = $region24
        $region23: #{mlp_forward.1} parent=11 // pred_region
          %s223 = smul.u32 32, %s28
          %s225 = ssub.s32 2048, 2048
          %226 = vsyncadd [#allocation6], %s225
          %s227 = smul.addr %s223, 64
          %s228 = scalar_lea.hbm %s3, %s227
          %s229 = sshll.u32 [#allocation7], 4
          %s230 = int_to_ptr.vmem [resolvable:$true] %s229
          %235 = dma.hbm_to_vmem [thread:$0]  %s228, 2048, %s230, [#allocation6], 64, 64, 4
        $region24: #{mlp_forward.1} parent=11 // pred_fallthru
          _
        // Predicated region
        $region25: #{mlp_forward.1} parent=11 // pred_check
          %p236 = pneg %p155
        $region26: #{mlp_forward.1} parent=11 // pred_check_branch
          %238 = sbr.rel (%p236) target = $region28
        $region27: #{mlp_forward.1} parent=11 // pred_region
          _
        $region28: #{mlp_forward.1} parent=11 // pred_fallthru
          _
      $region12: #{mlp_forward.1} parent=5 // pred_fallthru
        _
      %p239 = scmp.lt.s32.totalorder %s18, 2
      // Predicated region
      $region29: #{mlp_forward.1} parent=5 // pred_check
        %p240 = pneg %p239
      $region30: #{mlp_forward.1} parent=5 // pred_check_branch
        %242 = sbr.rel (%p240) target = $region32
      $region31: #{mlp_forward.1} parent=5 // pred_region
        // Predicated region
        $region33: #{mlp_forward.1} parent=31 // pred_check
          %p243 = pneg %p50
        $region34: #{mlp_forward.1} parent=31 // pred_check_branch
          %245 = sbr.rel (%p243) target = $region36
        $region35: #{mlp_forward.1} parent=31 // pred_region
          %s246 = sand.u32 %s40, 1
          %s247 = scalar_lea.sflag [#allocation3], %s246
          %s248 = sand.u32 %s40, 1
          %s249 = smul.addr %s248, 256
          %s250 = scalar_lea.vmem [#allocation2], %s249
          %s251 = smul.u32 32, %s25
          %s253 = ssub.s32 4096, 4096
          %254 = vsyncadd %s247, %s253
          %s255 = smul.addr %s251, 128
          %s256 = scalar_lea.hbm %s0, %s255
          %s257 = sshll.u32 %s250, 4
          %s258 = int_to_ptr.vmem [resolvable:$true] %s257
          %263 = dma.hbm_to_vmem [thread:$0]  %s256, 4096, %s258, %s247, 128, 128, 8
        $region36: #{mlp_forward.1} parent=31 // pred_fallthru
          _
      $region32: #{mlp_forward.1} parent=5 // pred_fallthru
        _
      %p264 = scmp.le.s32.totalorder 1, %s18
      %p265 = scmp.lt.s32.totalorder %s18, 3
      %p266 = pnand %p264, %p265
      %p267 = pneg %p266
      // Predicated region
      $region37: #{mlp_forward.1} parent=5 // pred_check
        _
      $region38: #{mlp_forward.1} parent=5 // pred_check_branch
        %269 = sbr.rel (%p266) target = $region40
      $region39: #{mlp_forward.1} parent=5 // pred_region
        %s270 = ssub.s32 %s18, 1
        %s271 = sand.u32 %s43, 1
        %s272 = scalar_lea.sflag [#allocation3], %s271
        %s273 = sand.u32 %s43, 1
        %s274 = smul.addr %s273, 256
        %s275 = scalar_lea.vmem [#allocation2], %s274
        // Predicated region
        $region41: #{mlp_forward.1} parent=39 // pred_check
          %p276 = pneg %p56
        $region42: #{mlp_forward.1} parent=39 // pred_check_branch
          %278 = sbr.rel (%p276) target = $region44
        $region43: #{mlp_forward.1} parent=39 // pred_region
          %279 = dma.done %s272, 4096
        $region44: #{mlp_forward.1} parent=39 // pred_fallthru
          _
        // Predicated region
        $region45: #{mlp_forward.1} parent=39 // pred_check
          %p280 = pneg %p82
        $region46: #{mlp_forward.1} parent=39 // pred_check_branch
          %282 = sbr.rel (%p280) target = $region48
        $region47: #{mlp_forward.1} parent=39 // pred_region
          %283 = dma.done [#allocation6], 2048
        $region48: #{mlp_forward.1} parent=39 // pred_fallthru
          _
        // Predicated region
        $region49: #{mlp_forward.1} parent=39 // pred_check
          %p284 = pneg %p134
        $region50: #{mlp_forward.1} parent=39 // pred_check_branch
          %286 = sbr.rel (%p284) target = $region52
        $region51: #{mlp_forward.1} parent=39 // pred_region
          %287 = dma.done [#allocation6], 2048
        $region52: #{mlp_forward.1} parent=39 // pred_fallthru
          _
        %s288 = sand.u32 %s43, 1
        %s289 = scalar_lea.sflag [#allocation3], %s288
        %s290 = sand.u32 %s43, 1
        %s291 = smul.addr %s290, 256
        %s292 = scalar_lea.vmem [#allocation2], %s291
        %p293 = pneg %p56
        %p294 = pneg %p53
        %p295 = pneg %p82
        %p296 = pneg %p79
        %s297 = smul.u32 2, %s28
        %p298 = scmp.lt.s32.totalorder %s297, 1
        %s299 = scalar_select %p298, %s297, 1
        %s300 = scalar_lea.vmem %s2, %s299
        %p301 = pneg %p108
        %p302 = pneg %p105
        %p303 = pneg %p134
        %p304 = pneg %p131
        %p305 = pneg %p155
        %p306 = pneg %p152
        %p307 = pneg %p181
        %p308 = pneg %p178
        %s309 = sand.u32 %s168, 1
        %s310 = scalar_lea.sflag [#allocation4], %s309
        %s311 = sand.u32 %s168, 1
        %s312 = smul.addr %s311, 256
        %s313 = scalar_lea.vmem [#allocation8], %s312
        %s314 = smul.u32 32, %s27
        %s315 = smul.u32 2, %s28
        %s316 = smul.u32 2, %s28
        %p317 = scmp.lt.s32.totalorder %s316, 1
        %s318 = scalar_select %p317, %s316, 1
        %s319 = scalar_lea.vmem %s2, %s318
        %s320 = smul.u32 2, %s28
        %s321 = smul.u32 32, %s28
        %s322 = smul.u32 32, %s27
        %v324 = vld [vmem:[%s275] sm:$0xff]
        %v325 = vld [vmem:[%s275 + $0x8] sm:$0xff]
        %v326 = vld [vmem:[%s275 + $0x10] sm:$0xff]
        %v327 = vld [vmem:[%s275 + $0x18] sm:$0xff]
        %v328 = vld [vmem:[%s275 + $0x20] sm:$0xff]
        %v329 = vld [vmem:[%s275 + $0x28] sm:$0xff]
        %v330 = vld [vmem:[%s275 + $0x30] sm:$0xff]
        %v331 = vld [vmem:[%s275 + $0x38] sm:$0xff]
        %v332 = vld [vmem:[%s275 + $0x40] sm:$0xff]
        %v333 = vld [vmem:[%s275 + $0x48] sm:$0xff]
        %v334 = vld [vmem:[%s275 + $0x50] sm:$0xff]
        %v335 = vld [vmem:[%s275 + $0x58] sm:$0xff]
        %v336 = vld [vmem:[%s275 + $0x60] sm:$0xff]
        %v337 = vld [vmem:[%s275 + $0x68] sm:$0xff]
        %v338 = vld [vmem:[%s275 + $0x70] sm:$0xff]
        %v339 = vld [vmem:[%s275 + $0x78] sm:$0xff]
        %v340 = vld [vmem:[%s275 + $0x80] sm:$0xff]
        %v341 = vld [vmem:[%s275 + $0x88] sm:$0xff]
        %v342 = vld [vmem:[%s275 + $0x90] sm:$0xff]
        %v343 = vld [vmem:[%s275 + $0x98] sm:$0xff]
        %v344 = vld [vmem:[%s275 + $0xa0] sm:$0xff]
        %v345 = vld [vmem:[%s275 + $0xa8] sm:$0xff]
        %v346 = vld [vmem:[%s275 + $0xb0] sm:$0xff]
        %v347 = vld [vmem:[%s275 + $0xb8] sm:$0xff]
        %v348 = vld [vmem:[%s275 + $0xc0] sm:$0xff]
        %v349 = vld [vmem:[%s275 + $0xc8] sm:$0xff]
        %v350 = vld [vmem:[%s275 + $0xd0] sm:$0xff]
        %v351 = vld [vmem:[%s275 + $0xd8] sm:$0xff]
        %v352 = vld [vmem:[%s275 + $0xe0] sm:$0xff]
        %v353 = vld [vmem:[%s275 + $0xe8] sm:$0xff]
        %v354 = vld [vmem:[%s275 + $0xf0] sm:$0xff]
        %v355 = vld [vmem:[%s275 + $0xf8] sm:$0xff]
        %v356 = vpack.c.bf16 %v325, %v324
        %v357 = vpack.c.bf16 %v327, %v326
        %v358 = vpack.c.bf16 %v329, %v328
        %v359 = vpack.c.bf16 %v331, %v330
        %v360 = vpack.c.bf16 %v333, %v332
        %v361 = vpack.c.bf16 %v335, %v334
        %v362 = vpack.c.bf16 %v337, %v336
        %v363 = vpack.c.bf16 %v339, %v338
        %v364 = vpack.c.bf16 %v341, %v340
        %v365 = vpack.c.bf16 %v343, %v342
        %v366 = vpack.c.bf16 %v345, %v344
        %v367 = vpack.c.bf16 %v347, %v346
        %v368 = vpack.c.bf16 %v349, %v348
        %v369 = vpack.c.bf16 %v351, %v350
        %v370 = vpack.c.bf16 %v353, %v352
        %v371 = vpack.c.bf16 %v355, %v354
        %v372 = vld [vmem:[#allocation5] sm:$0xff]
        %v373 = vld [vmem:[#allocation5 + $0x8] sm:$0xff]
        %v374 = vld [vmem:[#allocation5 + $0x10] sm:$0xff]
        %v375 = vld [vmem:[#allocation5 + $0x18] sm:$0xff]
        %v376 = vld [vmem:[#allocation5 + $0x20] sm:$0xff]
        %v377 = vld [vmem:[#allocation5 + $0x28] sm:$0xff]
        %v378 = vld [vmem:[#allocation5 + $0x30] sm:$0xff]
        %v379 = vld [vmem:[#allocation5 + $0x38] sm:$0xff]
        %v380 = vld [vmem:[#allocation5 + $0x40] sm:$0xff]
        %v381 = vld [vmem:[#allocation5 + $0x48] sm:$0xff]
        %v382 = vld [vmem:[#allocation5 + $0x50] sm:$0xff]
        %v383 = vld [vmem:[#allocation5 + $0x58] sm:$0xff]
        %v384 = vld [vmem:[#allocation5 + $0x60] sm:$0xff]
        %v385 = vld [vmem:[#allocation5 + $0x68] sm:$0xff]
        %v386 = vld [vmem:[#allocation5 + $0x70] sm:$0xff]
        %v387 = vld [vmem:[#allocation5 + $0x78] sm:$0xff]
        %v388 = vld [vmem:[%s319] sm:$0x3]
        %v390 = vlaneseq
        %v391 = vshrl.u32 %v390, 7
        %v392 = vsub.s32 0, %v391
        %v393 = vrot.slane %v388, %v392
        %v394 = vlaneseq
        %v395 = vshrl.u32 %v394, 7
        %v396 = vsub.s32 1, %v395
        %v397 = vrot.slane %v388, %v396
        %v416 = vunpack.c.l.b16 %v372
        %v417 = vunpack.c.h.b16 %v372
        %v418 = vunpack.c.l.b16 %v373
        %v419 = vunpack.c.h.b16 %v373
        %v420 = vunpack.c.l.b16 %v374
        %v421 = vunpack.c.h.b16 %v374
        %v422 = vunpack.c.l.b16 %v375
        %v423 = vunpack.c.h.b16 %v375
        %v424 = vunpack.c.l.b16 %v376
        %v425 = vunpack.c.h.b16 %v376
        %v426 = vunpack.c.l.b16 %v377
        %v427 = vunpack.c.h.b16 %v377
        %v428 = vunpack.c.l.b16 %v378
        %v429 = vunpack.c.h.b16 %v378
        %v430 = vunpack.c.l.b16 %v379
        %v431 = vunpack.c.h.b16 %v379
        %v432 = vunpack.c.l.b16 %v380
        %v433 = vunpack.c.h.b16 %v380
        %v434 = vunpack.c.l.b16 %v381
        %v435 = vunpack.c.h.b16 %v381
        %v436 = vunpack.c.l.b16 %v382
        %v437 = vunpack.c.h.b16 %v382
        %v438 = vunpack.c.l.b16 %v383
        %v439 = vunpack.c.h.b16 %v383
        %v440 = vunpack.c.l.b16 %v384
        %v441 = vunpack.c.h.b16 %v384
        %v442 = vunpack.c.l.b16 %v385
        %v443 = vunpack.c.h.b16 %v385
        %v444 = vunpack.c.l.b16 %v386
        %v445 = vunpack.c.h.b16 %v386
        %v446 = vunpack.c.l.b16 %v387
        %v447 = vunpack.c.h.b16 %v387
        %v448 = vpack.c.b16 %v418, %v416
        %v449 = vpack.c.b16 %v419, %v417
        %v450 = vpack.c.b16 %v422, %v420
        %v451 = vpack.c.b16 %v423, %v421
        %v452 = vpack.c.b16 %v426, %v424
        %v453 = vpack.c.b16 %v427, %v425
        %v454 = vpack.c.b16 %v430, %v428
        %v455 = vpack.c.b16 %v431, %v429
        %v456 = vpack.c.b16 %v434, %v432
        %v457 = vpack.c.b16 %v435, %v433
        %v458 = vpack.c.b16 %v438, %v436
        %v459 = vpack.c.b16 %v439, %v437
        %v460 = vpack.c.b16 %v442, %v440
        %v461 = vpack.c.b16 %v443, %v441
        %v462 = vpack.c.b16 %v446, %v444
        %v463 = vpack.c.b16 %v447, %v445
        %480 = vmatprep.subr.bf16.mxu0 %v449
        %481 = vmatpush1.bf16.msra.mxu0 %v448
        %482 = vmatprep.subr.bf16.mxu0 %v451
        %483 = vmatpush1.bf16.msra.mxu0 %v450
        %484 = vmatprep.subr.bf16.mxu0 %v453
        %485 = vmatpush1.bf16.msra.mxu0 %v452
        %486 = vmatprep.subr.bf16.mxu0 %v455
        %487 = vmatpush1.bf16.msra.mxu0 %v454
        %488 = vmatprep.subr.bf16.mxu0 %v457
        %489 = vmatpush1.bf16.msra.mxu0 %v456
        %490 = vmatprep.subr.bf16.mxu0 %v459
        %491 = vmatpush1.bf16.msra.mxu0 %v458
        %492 = vmatprep.subr.bf16.mxu0 %v461
        %493 = vmatpush1.bf16.msra.mxu0 %v460
        %494 = vmatprep.subr.bf16.mxu0 %v463
        %495 = vmatpush1.bf16.msra.mxu0 %v462
        %496 = vmatprep.subr.bf16.mxu0 0
        %497 = vmatpush1.bf16.msra.mxu0 0
        %498 = vmatprep.subr.bf16.mxu0 0
        %499 = vmatpush1.bf16.msra.mxu0 0
        %500 = vmatprep.subr.bf16.mxu0 0
        %501 = vmatpush1.bf16.msra.mxu0 0
        %502 = vmatprep.subr.bf16.mxu0 0
        %503 = vmatpush1.bf16.msra.mxu0 0
        %504 = vmatprep.subr.bf16.mxu0 0
        %505 = vmatpush1.bf16.msra.mxu0 0
        %506 = vmatprep.subr.bf16.mxu0 0
        %507 = vmatpush1.bf16.msra.mxu0 0
        %508 = vmatprep.subr.bf16.mxu0 0
        %509 = vmatpush1.bf16.msra.mxu0 0
        %510 = vmatprep.subr.bf16.mxu0 0
        %511 = vmatpush1.bf16.msra.mxu0 0
        %512 = vmatprep.mubr.bf16.mxu0 0
        %513 = vmatmul.mubr.bf16.gmra.mrb[0].mxu0 %v356
        %v514 = vpop.f32.mrb[0].mxu0
        %v515 = vadd.f32 %v393, %v514
        %v516 = vpop.f32.mrb[0].mxu0
        %v517 = vadd.f32 %v397, %v516
        %v518 = vpop.f32.mrb[0].mxu0
        %v519 = vadd.f32 %v393, %v518
        %v520 = vpop.f32.mrb[0].mxu0
        %v521 = vadd.f32 %v397, %v520
        %522 = vmatprep.mubr.bf16.mxu0 0
        %523 = vmatmul.mubr.bf16.gmra.mrb[0].mxu0 %v357
        %v524 = vpop.f32.mrb[0].mxu0
        %v525 = vadd.f32 %v393, %v524
        %v526 = vpop.f32.mrb[0].mxu0
        %v527 = vadd.f32 %v397, %v526
        %v528 = vpop.f32.mrb[0].mxu0
        %v529 = vadd.f32 %v393, %v528
        %v530 = vpop.f32.mrb[0].mxu0
        %v531 = vadd.f32 %v397, %v530
        %532 = vmatprep.mubr.bf16.mxu0 0
        %533 = vmatmul.mubr.bf16.gmra.mrb[0].mxu0 %v358
        %v534 = vpop.f32.mrb[0].mxu0
        %v535 = vadd.f32 %v393, %v534
        %v536 = vpop.f32.mrb[0].mxu0
        %v537 = vadd.f32 %v397, %v536
        %v538 = vpop.f32.mrb[0].mxu0
        %v539 = vadd.f32 %v393, %v538
        %v540 = vpop.f32.mrb[0].mxu0
        %v541 = vadd.f32 %v397, %v540
        %542 = vmatprep.mubr.bf16.mxu0 0
        %543 = vmatmul.mubr.bf16.gmra.mrb[0].mxu0 %v359
        %v544 = vpop.f32.mrb[0].mxu0
        %v545 = vadd.f32 %v393, %v544
        %v546 = vpop.f32.mrb[0].mxu0
        %v547 = vadd.f32 %v397, %v546
        %v548 = vpop.f32.mrb[0].mxu0
        %v549 = vadd.f32 %v393, %v548
        %v550 = vpop.f32.mrb[0].mxu0
        %v551 = vadd.f32 %v397, %v550
        %552 = vmatprep.mubr.bf16.mxu0 0
        %553 = vmatmul.mubr.bf16.gmra.mrb[0].mxu0 %v360
        %v554 = vpop.f32.mrb[0].mxu0
        %v555 = vadd.f32 %v393, %v554
        %v556 = vpop.f32.mrb[0].mxu0
        %v557 = vadd.f32 %v397, %v556
        %v558 = vpop.f32.mrb[0].mxu0
        %v559 = vadd.f32 %v393, %v558
        %v560 = vpop.f32.mrb[0].mxu0
        %v561 = vadd.f32 %v397, %v560
        %562 = vmatprep.mubr.bf16.mxu0 0
        %563 = vmatmul.mubr.bf16.gmra.mrb[0].mxu0 %v361
        %v564 = vpop.f32.mrb[0].mxu0
        %v565 = vadd.f32 %v393, %v564
        %v566 = vpop.f32.mrb[0].mxu0
        %v567 = vadd.f32 %v397, %v566
        %v568 = vpop.f32.mrb[0].mxu0
        %v569 = vadd.f32 %v393, %v568
        %v570 = vpop.f32.mrb[0].mxu0
        %v571 = vadd.f32 %v397, %v570
        %572 = vmatprep.mubr.bf16.mxu0 0
        %573 = vmatmul.mubr.bf16.gmra.mrb[0].mxu0 %v362
        %v574 = vpop.f32.mrb[0].mxu0
        %v575 = vadd.f32 %v393, %v574
        %v576 = vpop.f32.mrb[0].mxu0
        %v577 = vadd.f32 %v397, %v576
        %v578 = vpop.f32.mrb[0].mxu0
        %v579 = vadd.f32 %v393, %v578
        %v580 = vpop.f32.mrb[0].mxu0
        %v581 = vadd.f32 %v397, %v580
        %582 = vmatprep.mubr.bf16.mxu0 0
        %583 = vmatmul.mubr.bf16.gmra.mrb[0].mxu0 %v363
        %v584 = vpop.f32.mrb[0].mxu0
        %v585 = vadd.f32 %v393, %v584
        %v586 = vpop.f32.mrb[0].mxu0
        %v587 = vadd.f32 %v397, %v586
        %v588 = vpop.f32.mrb[0].mxu0
        %v589 = vadd.f32 %v393, %v588
        %v590 = vpop.f32.mrb[0].mxu0
        %v591 = vadd.f32 %v397, %v590
        %592 = vmatprep.mubr.bf16.mxu0 0
        %593 = vmatmul.mubr.bf16.gmra.mrb[0].mxu0 %v364
        %v594 = vpop.f32.mrb[0].mxu0
        %v595 = vadd.f32 %v393, %v594
        %v596 = vpop.f32.mrb[0].mxu0
        %v597 = vadd.f32 %v397, %v596
        %v598 = vpop.f32.mrb[0].mxu0
        %v599 = vadd.f32 %v393, %v598
        %v600 = vpop.f32.mrb[0].mxu0
        %v601 = vadd.f32 %v397, %v600
        %602 = vmatprep.mubr.bf16.mxu0 0
        %603 = vmatmul.mubr.bf16.gmra.mrb[0].mxu0 %v365
        %v604 = vpop.f32.mrb[0].mxu0
        %v605 = vadd.f32 %v393, %v604
        %v606 = vpop.f32.mrb[0].mxu0
        %v607 = vadd.f32 %v397, %v606
        %v608 = vpop.f32.mrb[0].mxu0
        %v609 = vadd.f32 %v393, %v608
        %v610 = vpop.f32.mrb[0].mxu0
        %v611 = vadd.f32 %v397, %v610
        %612 = vmatprep.mubr.bf16.mxu0 0
        %613 = vmatmul.mubr.bf16.gmra.mrb[0].mxu0 %v366
        %v614 = vpop.f32.mrb[0].mxu0
        %v615 = vadd.f32 %v393, %v614
        %v616 = vpop.f32.mrb[0].mxu0
        %v617 = vadd.f32 %v397, %v616
        %v618 = vpop.f32.mrb[0].mxu0
        %v619 = vadd.f32 %v393, %v618
        %v620 = vpop.f32.mrb[0].mxu0
        %v621 = vadd.f32 %v397, %v620
        %622 = vmatprep.mubr.bf16.mxu0 0
        %623 = vmatmul.mubr.bf16.gmra.mrb[0].mxu0 %v367
        %v624 = vpop.f32.mrb[0].mxu0
        %v625 = vadd.f32 %v393, %v624
        %v626 = vpop.f32.mrb[0].mxu0
        %v627 = vadd.f32 %v397, %v626
        %v628 = vpop.f32.mrb[0].mxu0
        %v629 = vadd.f32 %v393, %v628
        %v630 = vpop.f32.mrb[0].mxu0
        %v631 = vadd.f32 %v397, %v630
        %632 = vmatprep.mubr.bf16.mxu0 0
        %633 = vmatmul.mubr.bf16.gmra.mrb[0].mxu0 %v368
        %v634 = vpop.f32.mrb[0].mxu0
        %v635 = vadd.f32 %v393, %v634
        %v636 = vpop.f32.mrb[0].mxu0
        %v637 = vadd.f32 %v397, %v636
        %v638 = vpop.f32.mrb[0].mxu0
        %v639 = vadd.f32 %v393, %v638
        %v640 = vpop.f32.mrb[0].mxu0
        %v641 = vadd.f32 %v397, %v640
        %642 = vmatprep.mubr.bf16.mxu0 0
        %643 = vmatmul.mubr.bf16.gmra.mrb[0].mxu0 %v369
        %v644 = vpop.f32.mrb[0].mxu0
        %v645 = vadd.f32 %v393, %v644
        %v646 = vpop.f32.mrb[0].mxu0
        %v647 = vadd.f32 %v397, %v646
        %v648 = vpop.f32.mrb[0].mxu0
        %v649 = vadd.f32 %v393, %v648
        %v650 = vpop.f32.mrb[0].mxu0
        %v651 = vadd.f32 %v397, %v650
        %652 = vmatprep.mubr.bf16.mxu0 0
        %653 = vmatmul.mubr.bf16.gmra.mrb[0].mxu0 %v370
        %v654 = vpop.f32.mrb[0].mxu0
        %v655 = vadd.f32 %v393, %v654
        %v656 = vpop.f32.mrb[0].mxu0
        %v657 = vadd.f32 %v397, %v656
        %v658 = vpop.f32.mrb[0].mxu0
        %v659 = vadd.f32 %v393, %v658
        %v660 = vpop.f32.mrb[0].mxu0
        %v661 = vadd.f32 %v397, %v660
        %662 = vmatprep.mubr.bf16.mxu0 0
        %663 = vmatmul.mubr.bf16.gmra.mrb[0].mxu0 %v371
        %v664 = vpop.f32.mrb[0].mxu0
        %v665 = vadd.f32 %v393, %v664
        %v666 = vpop.f32.mrb[0].mxu0
        %v667 = vadd.f32 %v397, %v666
        %v668 = vpop.f32.mrb[0].mxu0
        %v669 = vadd.f32 %v393, %v668
        %v670 = vpop.f32.mrb[0].mxu0
        %v671 = vadd.f32 %v397, %v670
        %672 = vdwg.mxu0
        %v673 = vpack.c.bf16 %v519, %v515
        %v674 = vpack.c.bf16 %v521, %v517
        %v675 = vpack.c.bf16 %v529, %v525
        %v676 = vpack.c.bf16 %v531, %v527
        %v677 = vpack.c.bf16 %v539, %v535
        %v678 = vpack.c.bf16 %v541, %v537
        %v679 = vpack.c.bf16 %v549, %v545
        %v680 = vpack.c.bf16 %v551, %v547
        %v681 = vpack.c.bf16 %v559, %v555
        %v682 = vpack.c.bf16 %v561, %v557
        %v683 = vpack.c.bf16 %v569, %v565
        %v684 = vpack.c.bf16 %v571, %v567
        %v685 = vpack.c.bf16 %v579, %v575
        %v686 = vpack.c.bf16 %v581, %v577
        %v687 = vpack.c.bf16 %v589, %v585
        %v688 = vpack.c.bf16 %v591, %v587
        %v689 = vpack.c.bf16 %v599, %v595
        %v690 = vpack.c.bf16 %v601, %v597
        %v691 = vpack.c.bf16 %v609, %v605
        %v692 = vpack.c.bf16 %v611, %v607
        %v693 = vpack.c.bf16 %v619, %v615
        %v694 = vpack.c.bf16 %v621, %v617
        %v695 = vpack.c.bf16 %v629, %v625
        %v696 = vpack.c.bf16 %v631, %v627
        %v697 = vpack.c.bf16 %v639, %v635
        %v698 = vpack.c.bf16 %v641, %v637
        %v699 = vpack.c.bf16 %v649, %v645
        %v700 = vpack.c.bf16 %v651, %v647
        %v701 = vpack.c.bf16 %v659, %v655
        %v702 = vpack.c.bf16 %v661, %v657
        %v703 = vpack.c.bf16 %v669, %v665
        %v704 = vpack.c.bf16 %v671, %v667
        %v705 = vld [vmem:[#allocation7] sm:$0xf]
        %v706 = vld [vmem:[#allocation7 + $0x4] sm:$0xf]
        %v707 = vld [vmem:[#allocation7 + $0x8] sm:$0xf]
        %v708 = vld [vmem:[#allocation7 + $0xc] sm:$0xf]
        %v709 = vld [vmem:[#allocation7 + $0x10] sm:$0xf]
        %v710 = vld [vmem:[#allocation7 + $0x14] sm:$0xf]
        %v711 = vld [vmem:[#allocation7 + $0x18] sm:$0xf]
        %v712 = vld [vmem:[#allocation7 + $0x1c] sm:$0xf]
        %v713 = vld [vmem:[#allocation7 + $0x20] sm:$0xf]
        %v714 = vld [vmem:[#allocation7 + $0x24] sm:$0xf]
        %v715 = vld [vmem:[#allocation7 + $0x28] sm:$0xf]
        %v716 = vld [vmem:[#allocation7 + $0x2c] sm:$0xf]
        %v717 = vld [vmem:[#allocation7 + $0x30] sm:$0xf]
        %v718 = vld [vmem:[#allocation7 + $0x34] sm:$0xf]
        %v719 = vld [vmem:[#allocation7 + $0x38] sm:$0xf]
        %v720 = vld [vmem:[#allocation7 + $0x3c] sm:$0xf]
        %v721 = vld [vmem:[#allocation7 + $0x40] sm:$0xf]
        %v722 = vld [vmem:[#allocation7 + $0x44] sm:$0xf]
        %v723 = vld [vmem:[#allocation7 + $0x48] sm:$0xf]
        %v724 = vld [vmem:[#allocation7 + $0x4c] sm:$0xf]
        %v725 = vld [vmem:[#allocation7 + $0x50] sm:$0xf]
        %v726 = vld [vmem:[#allocation7 + $0x54] sm:$0xf]
        %v727 = vld [vmem:[#allocation7 + $0x58] sm:$0xf]
        %v728 = vld [vmem:[#allocation7 + $0x5c] sm:$0xf]
        %v729 = vld [vmem:[#allocation7 + $0x60] sm:$0xf]
        %v730 = vld [vmem:[#allocation7 + $0x64] sm:$0xf]
        %v731 = vld [vmem:[#allocation7 + $0x68] sm:$0xf]
        %v732 = vld [vmem:[#allocation7 + $0x6c] sm:$0xf]
        %v733 = vld [vmem:[#allocation7 + $0x70] sm:$0xf]
        %v734 = vld [vmem:[#allocation7 + $0x74] sm:$0xf]
        %v735 = vld [vmem:[#allocation7 + $0x78] sm:$0xf]
        %v736 = vld [vmem:[#allocation7 + $0x7c] sm:$0xf]
        %v737 = vld [vmem:[%s4] sm:$0x1]
        %v739 = vlaneseq
        %v740 = vshrl.u32 %v739, 7
        %v741 = vsub.s32 0, %v740
        %v742 = vrot.slane %v737, %v741
        %v776 = vunpack.c.l.b16 %v705
        %v777 = vunpack.c.l.b16 %v706
        %v778 = vunpack.c.l.b16 %v707
        %v779 = vunpack.c.l.b16 %v708
        %v780 = vunpack.c.l.b16 %v709
        %v781 = vunpack.c.l.b16 %v710
        %v782 = vunpack.c.l.b16 %v711
        %v783 = vunpack.c.l.b16 %v712
        %v784 = vunpack.c.l.b16 %v713
        %v785 = vunpack.c.l.b16 %v714
        %v786 = vunpack.c.l.b16 %v715
        %v787 = vunpack.c.l.b16 %v716
        %v788 = vunpack.c.l.b16 %v717
        %v789 = vunpack.c.l.b16 %v718
        %v790 = vunpack.c.l.b16 %v719
        %v791 = vunpack.c.l.b16 %v720
        %v792 = vunpack.c.l.b16 %v721
        %v793 = vunpack.c.l.b16 %v722
        %v794 = vunpack.c.l.b16 %v723
        %v795 = vunpack.c.l.b16 %v724
        %v796 = vunpack.c.l.b16 %v725
        %v797 = vunpack.c.l.b16 %v726
        %v798 = vunpack.c.l.b16 %v727
        %v799 = vunpack.c.l.b16 %v728
        %v800 = vunpack.c.l.b16 %v729
        %v801 = vunpack.c.l.b16 %v730
        %v802 = vunpack.c.l.b16 %v731
        %v803 = vunpack.c.l.b16 %v732
        %v804 = vunpack.c.l.b16 %v733
        %v805 = vunpack.c.l.b16 %v734
        %v806 = vunpack.c.l.b16 %v735
        %v807 = vunpack.c.l.b16 %v736
        %v808 = vpack.c.b16 %v777, %v776
        %v809 = vpack.c.b16 %v779, %v778
        %v810 = vpack.c.b16 %v781, %v780
        %v811 = vpack.c.b16 %v783, %v782
        %v812 = vpack.c.b16 %v785, %v784
        %v813 = vpack.c.b16 %v787, %v786
        %v814 = vpack.c.b16 %v789, %v788
        %v815 = vpack.c.b16 %v791, %v790
        %v816 = vpack.c.b16 %v793, %v792
        %v817 = vpack.c.b16 %v795, %v794
        %v818 = vpack.c.b16 %v797, %v796
        %v819 = vpack.c.b16 %v799, %v798
        %v820 = vpack.c.b16 %v801, %v800
        %v821 = vpack.c.b16 %v803, %v802
        %v822 = vpack.c.b16 %v805, %v804
        %v823 = vpack.c.b16 %v807, %v806
        %840 = vmatprep.subr.bf16.mxu0 0
        %841 = vmatpush1.bf16.msra.mxu0 %v808
        %842 = vmatprep.subr.bf16.mxu0 0
        %843 = vmatpush1.bf16.msra.mxu0 %v809
        %844 = vmatprep.subr.bf16.mxu0 0
        %845 = vmatpush1.bf16.msra.mxu0 %v810
        %846 = vmatprep.subr.bf16.mxu0 0
        %847 = vmatpush1.bf16.msra.mxu0 %v811
        %848 = vmatprep.subr.bf16.mxu0 0
        %849 = vmatpush1.bf16.msra.mxu0 %v812
        %850 = vmatprep.subr.bf16.mxu0 0
        %851 = vmatpush1.bf16.msra.mxu0 %v813
        %852 = vmatprep.subr.bf16.mxu0 0
        %853 = vmatpush1.bf16.msra.mxu0 %v814
        %854 = vmatprep.subr.bf16.mxu0 0
        %855 = vmatpush1.bf16.msra.mxu0 %v815
        %856 = vmatprep.subr.bf16.mxu0 0
        %857 = vmatpush1.bf16.msra.mxu0 %v816
        %858 = vmatprep.subr.bf16.mxu0 0
        %859 = vmatpush1.bf16.msra.mxu0 %v817
        %860 = vmatprep.subr.bf16.mxu0 0
        %861 = vmatpush1.bf16.msra.mxu0 %v818
        %862 = vmatprep.subr.bf16.mxu0 0
        %863 = vmatpush1.bf16.msra.mxu0 %v819
        %864 = vmatprep.subr.bf16.mxu0 0
        %865 = vmatpush1.bf16.msra.mxu0 %v820
        %866 = vmatprep.subr.bf16.mxu0 0
        %867 = vmatpush1.bf16.msra.mxu0 %v821
        %868 = vmatprep.subr.bf16.mxu0 0
        %869 = vmatpush1.bf16.msra.mxu0 %v822
        %870 = vmatprep.subr.bf16.mxu0 0
        %871 = vmatpush1.bf16.msra.mxu0 %v823
        %872 = vmatprep.mubr.bf16.mxu0 %v674
        %873 = vmatmul.mubr.bf16.gmra.mrb[0].mxu0 %v673
        %v874 = vpop.f32.mrb[0].mxu0
        %v875 = vadd.f32 %v742, %v874
        %v876 = vpop.f32.mrb[0].mxu0
        %v877 = vpop.f32.mrb[0].mxu0
        %v878 = vadd.f32 %v742, %v877
        %v879 = vpop.f32.mrb[0].mxu0
        %880 = vmatprep.mubr.bf16.mxu0 %v676
        %881 = vmatmul.mubr.bf16.gmra.mrb[0].mxu0 %v675
        %v882 = vpop.f32.mrb[0].mxu0
        %v883 = vadd.f32 %v742, %v882
        %v884 = vpop.f32.mrb[0].mxu0
        %v885 = vpop.f32.mrb[0].mxu0
        %v886 = vadd.f32 %v742, %v885
        %v887 = vpop.f32.mrb[0].mxu0
        %888 = vmatprep.mubr.bf16.mxu0 %v678
        %889 = vmatmul.mubr.bf16.gmra.mrb[0].mxu0 %v677
        %v890 = vpop.f32.mrb[0].mxu0
        %v891 = vadd.f32 %v742, %v890
        %v892 = vpop.f32.mrb[0].mxu0
        %v893 = vpop.f32.mrb[0].mxu0
        %v894 = vadd.f32 %v742, %v893
        %v895 = vpop.f32.mrb[0].mxu0
        %896 = vmatprep.mubr.bf16.mxu0 %v680
        %897 = vmatmul.mubr.bf16.gmra.mrb[0].mxu0 %v679
        %v898 = vpop.f32.mrb[0].mxu0
        %v899 = vadd.f32 %v742, %v898
        %v900 = vpop.f32.mrb[0].mxu0
        %v901 = vpop.f32.mrb[0].mxu0
        %v902 = vadd.f32 %v742, %v901
        %v903 = vpop.f32.mrb[0].mxu0
        %904 = vmatprep.mubr.bf16.mxu0 %v682
        %905 = vmatmul.mubr.bf16.gmra.mrb[0].mxu0 %v681
        %v906 = vpop.f32.mrb[0].mxu0
        %v907 = vadd.f32 %v742, %v906
        %v908 = vpop.f32.mrb[0].mxu0
        %v909 = vpop.f32.mrb[0].mxu0
        %v910 = vadd.f32 %v742, %v909
        %v911 = vpop.f32.mrb[0].mxu0
        %912 = vmatprep.mubr.bf16.mxu0 %v684
        %913 = vmatmul.mubr.bf16.gmra.mrb[0].mxu0 %v683
        %v914 = vpop.f32.mrb[0].mxu0
        %v915 = vadd.f32 %v742, %v914
        %v916 = vpop.f32.mrb[0].mxu0
        %v917 = vpop.f32.mrb[0].mxu0
        %v918 = vadd.f32 %v742, %v917
        %v919 = vpop.f32.mrb[0].mxu0
        %920 = vmatprep.mubr.bf16.mxu0 %v686
        %921 = vmatmul.mubr.bf16.gmra.mrb[0].mxu0 %v685
        %v922 = vpop.f32.mrb[0].mxu0
        %v923 = vadd.f32 %v742, %v922
        %v924 = vpop.f32.mrb[0].mxu0
        %v925 = vpop.f32.mrb[0].mxu0
        %v926 = vadd.f32 %v742, %v925
        %v927 = vpop.f32.mrb[0].mxu0
        %928 = vmatprep.mubr.bf16.mxu0 %v688
        %929 = vmatmul.mubr.bf16.gmra.mrb[0].mxu0 %v687
        %v930 = vpop.f32.mrb[0].mxu0
        %v931 = vadd.f32 %v742, %v930
        %v932 = vpop.f32.mrb[0].mxu0
        %v933 = vpop.f32.mrb[0].mxu0
        %v934 = vadd.f32 %v742, %v933
        %v935 = vpop.f32.mrb[0].mxu0
        %936 = vmatprep.mubr.bf16.mxu0 %v690
        %937 = vmatmul.mubr.bf16.gmra.mrb[0].mxu0 %v689
        %v938 = vpop.f32.mrb[0].mxu0
        %v939 = vadd.f32 %v742, %v938
        %v940 = vpop.f32.mrb[0].mxu0
        %v941 = vpop.f32.mrb[0].mxu0
        %v942 = vadd.f32 %v742, %v941
        %v943 = vpop.f32.mrb[0].mxu0
        %944 = vmatprep.mubr.bf16.mxu0 %v692
        %945 = vmatmul.mubr.bf16.gmra.mrb[0].mxu0 %v691
        %v946 = vpop.f32.mrb[0].mxu0
        %v947 = vadd.f32 %v742, %v946
        %v948 = vpop.f32.mrb[0].mxu0
        %v949 = vpop.f32.mrb[0].mxu0
        %v950 = vadd.f32 %v742, %v949
        %v951 = vpop.f32.mrb[0].mxu0
        %952 = vmatprep.mubr.bf16.mxu0 %v694
        %953 = vmatmul.mubr.bf16.gmra.mrb[0].mxu0 %v693
        %v954 = vpop.f32.mrb[0].mxu0
        %v955 = vadd.f32 %v742, %v954
        %v956 = vpop.f32.mrb[0].mxu0
        %v957 = vpop.f32.mrb[0].mxu0
        %v958 = vadd.f32 %v742, %v957
        %v959 = vpop.f32.mrb[0].mxu0
        %960 = vmatprep.mubr.bf16.mxu0 %v696
        %961 = vmatmul.mubr.bf16.gmra.mrb[0].mxu0 %v695
        %v962 = vpop.f32.mrb[0].mxu0
        %v963 = vadd.f32 %v742, %v962
        %v964 = vpop.f32.mrb[0].mxu0
        %v965 = vpop.f32.mrb[0].mxu0
        %v966 = vadd.f32 %v742, %v965
        %v967 = vpop.f32.mrb[0].mxu0
        %968 = vmatprep.mubr.bf16.mxu0 %v698
        %969 = vmatmul.mubr.bf16.gmra.mrb[0].mxu0 %v697
        %v970 = vpop.f32.mrb[0].mxu0
        %v971 = vadd.f32 %v742, %v970
        %v972 = vpop.f32.mrb[0].mxu0
        %v973 = vpop.f32.mrb[0].mxu0
        %v974 = vadd.f32 %v742, %v973
        %v975 = vpop.f32.mrb[0].mxu0
        %976 = vmatprep.mubr.bf16.mxu0 %v700
        %977 = vmatmul.mubr.bf16.gmra.mrb[0].mxu0 %v699
        %v978 = vpop.f32.mrb[0].mxu0
        %v979 = vadd.f32 %v742, %v978
        %v980 = vpop.f32.mrb[0].mxu0
        %v981 = vpop.f32.mrb[0].mxu0
        %v982 = vadd.f32 %v742, %v981
        %v983 = vpop.f32.mrb[0].mxu0
        %984 = vmatprep.mubr.bf16.mxu0 %v702
        %985 = vmatmul.mubr.bf16.gmra.mrb[0].mxu0 %v701
        %v986 = vpop.f32.mrb[0].mxu0
        %v987 = vadd.f32 %v742, %v986
        %v988 = vpop.f32.mrb[0].mxu0
        %v989 = vpop.f32.mrb[0].mxu0
        %v990 = vadd.f32 %v742, %v989
        %v991 = vpop.f32.mrb[0].mxu0
        %992 = vmatprep.mubr.bf16.mxu0 %v704
        %993 = vmatmul.mubr.bf16.gmra.mrb[0].mxu0 %v703
        %v994 = vpop.f32.mrb[0].mxu0
        %v995 = vadd.f32 %v742, %v994
        %v996 = vpop.f32.mrb[0].mxu0
        %v997 = vpop.f32.mrb[0].mxu0
        %v998 = vadd.f32 %v742, %v997
        %v999 = vpop.f32.mrb[0].mxu0
        %1000 = vdwg.mxu0
        %1001 = vst [vmem:[%s313] sm:$0xff] %v875
        %1002 = vst [vmem:[%s313 + $0x8] sm:$0xff] %v878
        %1003 = vst [vmem:[%s313 + $0x10] sm:$0xff] %v883
        %1004 = vst [vmem:[%s313 + $0x18] sm:$0xff] %v886
        %1005 = vst [vmem:[%s313 + $0x20] sm:$0xff] %v891
        %1006 = vst [vmem:[%s313 + $0x28] sm:$0xff] %v894
        %1007 = vst [vmem:[%s313 + $0x30] sm:$0xff] %v899
        %1008 = vst [vmem:[%s313 + $0x38] sm:$0xff] %v902
        %1009 = vst [vmem:[%s313 + $0x40] sm:$0xff] %v907
        %1010 = vst [vmem:[%s313 + $0x48] sm:$0xff] %v910
        %1011 = vst [vmem:[%s313 + $0x50] sm:$0xff] %v915
        %1012 = vst [vmem:[%s313 + $0x58] sm:$0xff] %v918
        %1013 = vst [vmem:[%s313 + $0x60] sm:$0xff] %v923
        %1014 = vst [vmem:[%s313 + $0x68] sm:$0xff] %v926
        %1015 = vst [vmem:[%s313 + $0x70] sm:$0xff] %v931
        %1016 = vst [vmem:[%s313 + $0x78] sm:$0xff] %v934
        %1017 = vst [vmem:[%s313 + $0x80] sm:$0xff] %v939
        %1018 = vst [vmem:[%s313 + $0x88] sm:$0xff] %v942
        %1019 = vst [vmem:[%s313 + $0x90] sm:$0xff] %v947
        %1020 = vst [vmem:[%s313 + $0x98] sm:$0xff] %v950
        %1021 = vst [vmem:[%s313 + $0xa0] sm:$0xff] %v955
        %1022 = vst [vmem:[%s313 + $0xa8] sm:$0xff] %v958
        %1023 = vst [vmem:[%s313 + $0xb0] sm:$0xff] %v963
        %1024 = vst [vmem:[%s313 + $0xb8] sm:$0xff] %v966
        %1025 = vst [vmem:[%s313 + $0xc0] sm:$0xff] %v971
        %1026 = vst [vmem:[%s313 + $0xc8] sm:$0xff] %v974
        %1027 = vst [vmem:[%s313 + $0xd0] sm:$0xff] %v979
        %1028 = vst [vmem:[%s313 + $0xd8] sm:$0xff] %v982
        %1029 = vst [vmem:[%s313 + $0xe0] sm:$0xff] %v987
        %1030 = vst [vmem:[%s313 + $0xe8] sm:$0xff] %v990
        %1031 = vst [vmem:[%s313 + $0xf0] sm:$0xff] %v995
        %1032 = vst [vmem:[%s313 + $0xf8] sm:$0xff] %v998
        %s1033 = sand.u32 %s168, 1
        %s1034 = scalar_lea.sflag [#allocation4], %s1033
        %s1035 = sand.u32 %s168, 1
        %s1036 = smul.addr %s1035, 256
        %s1037 = scalar_lea.vmem [#allocation8], %s1036
        // Predicated region
        $region53: #{mlp_forward.1} parent=39 // pred_check
          %p1038 = pneg %p178
        $region54: #{mlp_forward.1} parent=39 // pred_check_branch
          %1040 = sbr.rel (%p1038) target = $region56
        $region55: #{mlp_forward.1} parent=39 // pred_region
          %s1041 = smul.u32 32, %s27
          %s1043 = ssub.s32 4096, 4096
          %1044 = vsyncadd %s1034, %s1043
          %s1045 = smul.addr %s1041, 128
          %s1046 = scalar_lea.hbm %s5, %s1045
          %s1047 = sshll.u32 %s1037, 4
          %s1048 = int_to_ptr.vmem [resolvable:$true] %s1047
          %1053 = dma.vmem_to_hbm [thread:$0]  %s1048, 4096, %s1046, %s1034, 128, 128, 8
        $region56: #{mlp_forward.1} parent=39 // pred_fallthru
          _
      $region40: #{mlp_forward.1} parent=5 // pred_fallthru
        _
      %p1054 = scmp.le.s32.totalorder 2, %s18
      // Predicated region
      $region57: #{mlp_forward.1} parent=5 // pred_check
        %p1055 = pneg %p1054
      $region58: #{mlp_forward.1} parent=5 // pred_check_branch
        %1057 = sbr.rel (%p1055) target = $region60
      $region59: #{mlp_forward.1} parent=5 // pred_region
        %s1058 = ssub.s32 %s18, 2
        // Predicated region
        $region61: #{mlp_forward.1} parent=59 // pred_check
          %p1059 = pneg %p184
        $region62: #{mlp_forward.1} parent=59 // pred_check_branch
          %1061 = sbr.rel (%p1059) target = $region64
        $region63: #{mlp_forward.1} parent=59 // pred_region
          %s1062 = sand.u32 %s169, 1
          %s1063 = scalar_lea.sflag [#allocation4], %s1062
          %s1064 = sand.u32 %s169, 1
          %s1065 = smul.addr %s1064, 256
          %s1066 = scalar_lea.vmem [#allocation8], %s1065
          %1067 = dma.done %s1063, 4096
        $region64: #{mlp_forward.1} parent=59 // pred_fallthru
          _
      $region60: #{mlp_forward.1} parent=5 // pred_fallthru
        _
    $region6: #{mlp_forward.1} parent=1 // loop_footer
      %s22 = sadd.s32 1, %s18
    $region7: #{mlp_forward.1} parent=1 // loop_footer_branch
      %17 = sbr.rel target = $region3
    $region8: #{mlp_forward.1} parent=1 // loop_exit
      _
    %1068 = vsyncpa [#allocation3], 1
    %s1069 = scalar_lea.sflag [#allocation3], 1
    %1070 = vsyncpa %s1069, 1
    %1071 = vsyncpa [#allocation6], 1
    %1072 = vsyncpa [#allocation4], 1
    %s1073 = scalar_lea.sflag [#allocation4], 1
    %1074 = vsyncpa %s1073, 1

</llo_original>
